<compile_context>
chip_gen: v7x
topology: tpu7x:2x2x1
jax: 0.10.0
libtpu: 0.0.40
codegen_flags: <defaults>
</compile_context>

<pallas_src>
import math

import jax
import jax.numpy as jnp
from jax import lax
from jax.experimental import pallas as pl
from jax.experimental.pallas import tpu as pltpu


def _round_up(v, m):
    return ((v + m - 1) // m) * m


def _vmem_capacity_bytes():
    try:
        info = pltpu.get_tpu_info()
        cap = int(getattr(info, "vmem_capacity_bytes", 0) or 0)
        if cap > 0:
            return cap
    except Exception:
        pass
    return 128 << 20  # v5e/v6e default


def _ensemble_fc_kernel_single_k(x_ref, w_ref, b_ref, o_ref):
    """K_tiles == 1: fused matmul + bias, no accumulator scratch.

    x_ref: (eblk, tm, tk)  w_ref: (eblk, tk, tn)
    b_ref: (eblk, 1, tn) f32  o_ref: (eblk, tm, tn)
    """
    acc = lax.dot_general(
        x_ref[...],
        w_ref[...],
        dimension_numbers=(((2,), (1,)), ((0,), (0,))),
        preferred_element_type=jnp.float32,
    )
    o_ref[...] = (acc + b_ref[...]).astype(o_ref.dtype)


def _ensemble_fc_kernel_multi_k(x_ref, w_ref, b_ref, o_ref, acc_ref):
    """K_tiles > 1: f32 VMEM accumulator, zero-init / bias+store under pl.when."""
    k = pl.program_id(3)

    @pl.when(k == 0)
    def _():
        acc_ref[...] = jnp.zeros_like(acc_ref)

    acc_ref[...] += lax.dot_general(
        x_ref[...],
        w_ref[...],
        dimension_numbers=(((2,), (1,)), ((0,), (0,))),
        preferred_element_type=jnp.float32,
    )

    @pl.when(k == pl.num_programs(3) - 1)
    def _():
        o_ref[...] = (acc_ref[...] + b_ref[...]).astype(o_ref.dtype)


def ensemble_fc(x, weight, bias, *, compute_dtype=None, tm=None, tn=None, tk=None,
                eblk=None):
    """out[e] = x[e] @ weight[e] + bias[e]   (Pallas TPU)."""
    E, B, Fin = x.shape
    Ew, Finw, Fout = weight.shape
    assert Ew == E and Finw == Fin and bias.shape == (E, Fout)
    out_dtype = x.dtype

    # --- compute dtype: bf16 by default for f32 inputs (accumulation stays f32) ---
    if compute_dtype is None:
        compute_dtype = jnp.bfloat16 if x.dtype == jnp.float32 else x.dtype
    compute_dtype = jnp.dtype(compute_dtype)
    elem_c = compute_dtype.itemsize
    elem_o = jnp.dtype(out_dtype).itemsize

    # --- per-generation VMEM budget ---
    vmem_cap = _vmem_capacity_bytes()
    if vmem_cap <= (64 << 20):  # v7x-class: 64 MiB/TC, 2 TCs/chip
        vmem_budget = max(32 << 20, min(vmem_cap - (8 << 20), 56 << 20))
        two_tensorcores = True
    else:                       # v5e/v6e: 128 MiB, 1 TC
        vmem_budget = max(32 << 20, min(vmem_cap - (24 << 20), 100 << 20))
        two_tensorcores = False

    Kp_full = _round_up(Fin, 128)
    Np_full = _round_up(Fout, 128)

    # --- tk/tn: prefer whole per-member weight resident (read x & W exactly once) ---
    if 2 * Kp_full * Np_full * elem_c <= vmem_budget // 4:
        tk0, tn0 = Kp_full, Np_full
    else:
        tn0 = min(Np_full, 2048)
        if tn0 >= 256:
            tn0 = (tn0 // 256) * 256          # 256-aligned for v6e/v7x MXU
        tk_budget = (vmem_budget // 4) // max(2 * tn0 * elem_c, 1)
        tk0 = min(Kp_full, 2048, tk_budget)
        align = 256 if tk0 >= 256 else 128
        tk0 = max(128, (tk0 // align) * align)
        tk0 = min(tk0, Kp_full)
    if tk is None:
        tk = tk0
    if tn is None:
        tn = tn0

    # --- tm: fill the remaining budget (double-buffered x/out + f32 acc), cap 512 ---
    if tm is None:
        rest = max(vmem_budget - 2 * tk * tn * elem_c, 0)
        per_row = 2 * (tk * elem_c + tn * elem_o) + tn * 4
        tm_cap = max(8, min(512, ((rest // max(per_row, 1)) // 8) * 8))
        Bp8 = _round_up(B, 8)
        tm = Bp8 if Bp8 <= tm_cap else tm_cap

    Bp = _round_up(B, tm)
    Kp = _round_up(Fin, tk)
    Np = _round_up(Fout, tn)
    Mt, Nt, Kt = Bp // tm, Np // tn, Kp // tk

    # --- how many ensemble members per grid step (single-tile-per-member path) ---
    if eblk is None:
        if Mt == 1 and Nt == 1 and Kt == 1:
            member_bytes = 2 * (tm * tk * elem_c + tk * tn * elem_c
                                + tn * 4 + tm * tn * elem_o)
            eblk = max(1, min(E, (vmem_budget // 3) // max(member_bytes, 1)))
            if two_tensorcores and E >= 2:
                eblk = min(eblk, E // 2)  # keep >=2 parallel grid steps (megacore)
            while E % eblk:               # must divide E
                eblk -= 1
        else:
            eblk = 1
    assert E % eblk == 0

    # --- cast first (pad in the narrow dtype), then zero-pad only where needed ---
    x_c = x if x.dtype == compute_dtype else x.astype(compute_dtype)
    w_c = weight if weight.dtype == compute_dtype else weight.astype(compute_dtype)
    b_c = bias.astype(jnp.float32).reshape(E, 1, Fout)
    if Bp != B or Kp != Fin:
        x_c = jnp.pad(x_c, ((0, 0), (0, Bp - B), (0, Kp - Fin)))
    if Kp != Fin or Np != Fout:
        w_c = jnp.pad(w_c, ((0, 0), (0, Kp - Fin), (0, Np - Fout)))
    if Np != Fout:
        b_c = jnp.pad(b_c, ((0, 0), (0, 0), (0, Np - Fout)))

    # --- non-reduction loop order: minimize HBM re-reads of the larger stream ---
    x_bytes = Bp * Kp * elem_c
    w_bytes = Kp * Np * elem_c
    traffic_m_inner = Nt * x_bytes + (Mt if Kt > 1 else 1) * w_bytes
    traffic_n_inner = (Nt if Kt > 1 else 1) * x_bytes + Mt * w_bytes
    m_inner = traffic_m_inner <= traffic_n_inner

    Ebt = E // eblk
    if Kt == 1:
        kernel = _ensemble_fc_kernel_single_k
        scratch_shapes = []
        if m_inner:
            grid = (Ebt, Nt, Mt)
            x_map = lambda e, n, m: (e, m, 0)
            w_map = lambda e, n, m: (e, 0, n)
            b_map = lambda e, n, m: (e, 0, n)
            o_map = lambda e, n, m: (e, m, n)
        else:
            grid = (Ebt, Mt, Nt)
            x_map = lambda e, m, n: (e, m, 0)
            w_map = lambda e, m, n: (e, 0, n)
            b_map = lambda e, m, n: (e, 0, n)
            o_map = lambda e, m, n: (e, m, n)
        dim_sem = ("parallel", "parallel", "parallel")
    else:
        kernel = _ensemble_fc_kernel_multi_k
        scratch_shapes = [pltpu.VMEM((eblk, tm, tn), jnp.float32)]
        if m_inner:
            grid = (Ebt, Nt, Mt, Kt)
            x_map = lambda e, n, m, k: (e, m, k)
            w_map = lambda e, n, m, k: (e, k, n)
            b_map = lambda e, n, m, k: (e, 0, n)
            o_map = lambda e, n, m, k: (e, m, n)
        else:
            grid = (Ebt, Mt, Nt, Kt)
            x_map = lambda e, m, n, k: (e, m, k)
            w_map = lambda e, m, n, k: (e, k, n)
            b_map = lambda e, m, n, k: (e, 0, n)
            o_map = lambda e, m, n, k: (e, m, n)
        dim_sem = ("parallel", "parallel", "parallel", "arbitrary")

    # --- VMEM limit: actual working set + headroom, clamped to per-gen budget ---
    block_bytes = eblk * (2 * (tm * tk + tk * tn) * elem_c
                          + 2 * tn * 4 + 2 * tm * tn * elem_o)
    acc_bytes = eblk * tm * tn * 4 if Kt > 1 else 0
    vmem_limit = int(min(max(block_bytes + acc_bytes + (4 << 20), 32 << 20),
                         vmem_budget))

    cost = pl.CostEstimate(
        flops=2 * E * B * Fin * Fout,
        transcendentals=0,
        bytes_accessed=(elem_c * (E * B * Fin + E * Fin * Fout)
                        + 4 * E * Fout + elem_o * E * B * Fout),
    )

    out_padded = pl.pallas_call(
        kernel,
        out_shape=jax.ShapeDtypeStruct((E, Bp, Np), out_dtype),
        grid_spec=pltpu.PrefetchScalarGridSpec(
            num_scalar_prefetch=0,
            grid=grid,
            in_specs=[
                pl.BlockSpec((eblk, tm, tk), x_map),
                pl.BlockSpec((eblk, tk, tn), w_map),
                pl.BlockSpec((eblk, 1, tn), b_map),
            ],
            out_specs=pl.BlockSpec((eblk, tm, tn), o_map),
            scratch_shapes=scratch_shapes,
        ),
        compiler_params=pltpu.CompilerParams(
            dimension_semantics=dim_sem,
            vmem_limit_bytes=vmem_limit,
        ),
        cost_estimate=cost,
    )(x_c, w_c, b_c)

    if Bp == B and Np == Fout:
        return out_padded
    return out_padded[:, :B, :Fout]


def init_params(key, ensemble_size, in_features, out_features, dtype=jnp.float32):
    """Deterministic re-implementation of EnsembleFC.reset_parameters()."""
    kw, kb = jax.random.split(key)
    # kaiming_uniform_(weight, a=sqrt(5)): fan_in = in_features (size(-2)),
    # gain = sqrt(2/(1+5)) = sqrt(1/3), bound = sqrt(3)*gain/sqrt(fan_in) = 1/sqrt(fan_in)
    w_bound = 1.0 / math.sqrt(in_features)
    weight = jax.random.uniform(
        kw, (ensemble_size, in_features, out_features),
        minval=-w_bound, maxval=w_bound, dtype=dtype)
    b_bound = 1.0 / math.sqrt(in_features)
    bias = jax.random.uniform(
        kb, (ensemble_size, out_features),
        minval=-b_bound, maxval=b_bound, dtype=dtype)
    return weight, bias


if __name__ == "__main__":
    # Case 1: the module's small shape in pure f32 — exact vs. f32 reference.
    # Exercises lane-padding (Fout=32 -> 128), the fused single-K kernel and the
    # eblk-batched (multiple ensemble members per grid step) path.
    E, B, Fin, Fout = 4, 8, 32, 32
    key = jax.random.PRNGKey(0)
    k_x, k_p = jax.random.split(key)
    x = jax.random.normal(k_x, (E, B, Fin), dtype=jnp.float32)
    weight, bias = init_params(k_p, E, Fin, Fout)

    out = jax.block_until_ready(ensemble_fc(x, weight, bias,
                                            compute_dtype=jnp.float32))
    ref = jnp.einsum("ebi,eio->ebo", x, weight) + bias[:, None, :]
    assert out.shape == (E, B, Fout)
    assert jnp.allclose(out, ref, atol=1e-5, rtol=1e-5)

    # Case 2: default bf16 compute, forced K tiling (tk=256 -> Kp=768, 3 K tiles)
    # — exercises the f32 accumulator init/finalize kernel and K zero-padding.
    E2, B2, Fin2, Fout2 = 2, 16, 640, 256
    k_x2, k_p2 = jax.random.split(jax.random.PRNGKey(0))
    x2 = jax.random.normal(k_x2, (E2, B2, Fin2), dtype=jnp.float32)
    w2, b2 = init_params(k_p2, E2, Fin2, Fout2)

    out2 = jax.block_until_ready(ensemble_fc(x2, w2, b2, tk=256))
    # Reference with the same bf16-cast inputs (accumulation stays f32).
    x2b = x2.astype(jnp.bfloat16).astype(jnp.float32)
    w2b = w2.astype(jnp.bfloat16).astype(jnp.float32)
    ref2 = jnp.einsum("ebi,eio->ebo", x2b, w2b) + b2[:, None, :]
    assert out2.shape == (E2, B2, Fout2)
    assert jnp.allclose(out2, ref2, atol=1e-3, rtol=1e-3)

    # Case 3: same shape, auto tiling (resident weight, single-K bf16 path).
    out3 = jax.block_until_ready(ensemble_fc(x2, w2, b2))
    assert out3.shape == (E2, B2, Fout2)
    assert jnp.allclose(out3, ref2, atol=1e-3, rtol=1e-3)

    print("KERNEL_OK")
</pallas_src>

<mosaic_0001>
module attributes {stable_mosaic.version = 11 : i64} {
  func.func @_ensemble_fc_kernel_single_k(%arg0: i32, %arg1: i32, %arg2: i32, %arg3: memref<4x8x128xf32, #tpu.memory_space<vmem>>, %arg4: memref<4x128x128xf32, #tpu.memory_space<vmem>>, %arg5: memref<4x1x128xf32, #tpu.memory_space<vmem>>, %arg6: memref<4x8x128xf32, #tpu.memory_space<vmem>>) attributes {dimension_semantics = [#tpu.dimension_semantics<parallel>, #tpu.dimension_semantics<parallel>, #tpu.dimension_semantics<parallel>], iteration_bounds = array<i64: 1, 1, 1>, scalar_prefetch = 0 : i64, scratch_operands = 0 : i64, tpu.core_type = #tpu.core_type<tc>, window_params = [{transform_indices = @transform_0, window_bounds = array<i64: 4, 8, 128>}, {transform_indices = @transform_1, window_bounds = array<i64: 4, 128, 128>}, {transform_indices = @transform_2, window_bounds = array<i64: 4, 1, 128>}, {transform_indices = @transform_3, window_bounds = array<i64: 4, 8, 128>}]} {
    %c0 = arith.constant 0 : index
    %c0_0 = arith.constant 0 : index
    %c0_1 = arith.constant 0 : index
    %0 = vector.load %arg3[%c0, %c0_0, %c0_1] : memref<4x8x128xf32, #tpu.memory_space<vmem>>, vector<4x8x128xf32>
    %c0_2 = arith.constant 0 : index
    %c0_3 = arith.constant 0 : index
    %c0_4 = arith.constant 0 : index
    %1 = vector.load %arg4[%c0_2, %c0_3, %c0_4] : memref<4x128x128xf32, #tpu.memory_space<vmem>>, vector<4x128x128xf32>
    %cst = arith.constant dense<0.000000e+00> : vector<4x8x128xf32>
    %2 = tpu.matmul %0, %1, %cst {dimension_numbers = #tpu.dot_dimension_numbers<[2], [1], [1], [2], [0, 0, 0, 1, 1, 2], [0], [0]>} : vector<4x8x128xf32>, vector<4x128x128xf32>, vector<4x8x128xf32> -> vector<4x8x128xf32>
    %c0_5 = arith.constant 0 : index
    %c0_6 = arith.constant 0 : index
    %c0_7 = arith.constant 0 : index
    %3 = vector.load %arg5[%c0_5, %c0_6, %c0_7] : memref<4x1x128xf32, #tpu.memory_space<vmem>>, vector<4x1x128xf32>
    %4 = vector.broadcast %3 : vector<4x1x128xf32> to vector<4x8x128xf32>
    %5 = arith.addf %2, %4 : vector<4x8x128xf32>
    %c0_8 = arith.constant 0 : index
    %c0_9 = arith.constant 0 : index
    %c0_10 = arith.constant 0 : index
    %6 = vector.load %arg6[%c0_8, %c0_9, %c0_10] : memref<4x8x128xf32, #tpu.memory_space<vmem>>, vector<4x8x128xf32>
    tpu.vector_store %arg6[%c0_8, %c0_9, %c0_10], %5 {strides = array<i32>} : memref<4x8x128xf32, #tpu.memory_space<vmem>>, vector<4x8x128xf32>,
    return
  }
  func.func @transform_0(%arg0: i32, %arg1: i32, %arg2: i32) -> (i32, i32, i32) {
    %c0_i32 = arith.constant 0 : i32
    %c0_i32_0 = arith.constant 0 : i32
    return %arg0, %arg2, %c0_i32 : i32, i32, i32
  }
  func.func @transform_1(%arg0: i32, %arg1: i32, %arg2: i32) -> (i32, i32, i32) {
    %c0_i32 = arith.constant 0 : i32
    %c0_i32_0 = arith.constant 0 : i32
    return %arg0, %c0_i32, %arg1 : i32, i32, i32
  }
  func.func @transform_2(%arg0: i32, %arg1: i32, %arg2: i32) -> (i32, i32, i32) {
    %c0_i32 = arith.constant 0 : i32
    %c0_i32_0 = arith.constant 0 : i32
    return %arg0, %c0_i32, %arg1 : i32, i32, i32
  }
  func.func @transform_3(%arg0: i32, %arg1: i32, %arg2: i32) -> (i32, i32, i32) {
    %c0_i32 = arith.constant 0 : i32
    return %arg0, %arg2, %arg1 : i32, i32, i32
  }
}

</mosaic_0001>

<llo_original>
// kernel: tpu_custom_call.1
$region0: #{tpu_custom_call.1}
  #allocation0 [shape = 'u32[]', space=smem, size = 0x4, offset = 0x4, fixed_abs, tag = 'smem constant byte address 0x4 - core index']
  #allocation1 [shape = 'u32[144,128]{1,0:T(1,128)}', space=vmem, size = 0x12000, scoped, tag = 'internal scratch']
  %s0 = inlined_call_operand.hbm [shape: f32[4,8,128], index: 0, kind: input, shape index: {}]
  %s1 = inlined_call_operand.hbm [shape: f32[4,128,128], index: 1, kind: input, shape index: {}]
  %s2 = inlined_call_operand.vmem [shape: f32[4,1,128], index: 2, kind: input, shape index: {}]
  %s3 = inlined_call_operand.hbm [shape: f32[4,8,128], index: 3, kind: output, shape index: {}]
  %s4 = sld [smem:[#allocation0]]
  $region30: #{tpu_custom_call.1} parent=0
    _
  %s6 = ssub.s32 1, %s4
  %s7 = scalar_select 0, %s6, %s4
  $region1: #{tpu_custom_call.1} parent=0
    #allocation2 [shape = 'u8[16384]{0}', space=vmem, size = 0x4000, scoped, tag = 'input window, operand 0, single buffered']
    #allocation3 [shape = 's32[1]{0}', space=sflag, size = 0x4, scoped, tag = 'scoped memory for tpu_custom_call.1']
    #allocation4 [shape = 's32[1]{0}', space=sflag, size = 0x4, scoped, tag = 'scoped memory for tpu_custom_call.1']
    #allocation5 [shape = 'u8[262144]{0}', space=vmem, size = 0x40000, scoped, tag = 'input window, operand 1, single buffered']
    #allocation6 [shape = 's32[1]{0}', space=sflag, size = 0x4, scoped, tag = 'scoped memory for tpu_custom_call.1']
    #allocation7 [shape = 'u8[16384]{0}', space=vmem, size = 0x4000, scoped, tag = 'output window, operand 0, single buffered']
    %8 = vsyncpa [#allocation3], 0
    %9 = vsyncpa [#allocation6], 0
    %10 = vsyncpa [#allocation4], 0
    // Predicated region
    $region2: #{tpu_custom_call.1} parent=1 // pred_check
      _
    $region3: #{tpu_custom_call.1} parent=1 // pred_check_branch
      %12 = sbr.rel (0) target = $region5
    $region4: #{tpu_custom_call.1} parent=1 // pred_region
      %s14 = ssub.s32 512, 512
      %15 = vsyncadd [#allocation3], %s14
      %s16 = sshll.u32 [#allocation2], 4
      %s17 = int_to_ptr.vmem [resolvable:$true] %s16
      %22 = dma.hbm_to_vmem [thread:$0]  %s0, 512, %s17, [#allocation3], 128, 128, 8
    $region5: #{tpu_custom_call.1} parent=1 // pred_fallthru
      _
    // Predicated region
    $region6: #{tpu_custom_call.1} parent=1 // pred_check
      _
    $region7: #{tpu_custom_call.1} parent=1 // pred_check_branch
      %24 = sbr.rel (0) target = $region9
    $region8: #{tpu_custom_call.1} parent=1 // pred_region
      %s26 = ssub.s32 8192, 8192
      %27 = vsyncadd [#allocation6], %s26
      %s28 = sshll.u32 [#allocation5], 4
      %s29 = int_to_ptr.vmem [resolvable:$true] %s28
      %34 = dma.hbm_to_vmem [thread:$0]  %s1, 8192, %s29, [#allocation6], 128, 128, 8
    $region9: #{tpu_custom_call.1} parent=1 // pred_fallthru
      _
    // Predicated region
    $region10: #{tpu_custom_call.1} parent=1 // pred_check
      _
    $region11: #{tpu_custom_call.1} parent=1 // pred_check_branch
      %36 = sbr.rel (0) target = $region13
    $region12: #{tpu_custom_call.1} parent=1 // pred_region
      _
    $region13: #{tpu_custom_call.1} parent=1 // pred_fallthru
      _
    // Predicated region
    $region14: #{tpu_custom_call.1} parent=1 // pred_check
      _
    $region15: #{tpu_custom_call.1} parent=1 // pred_check_branch
      %38 = sbr.rel (0) target = $region17
    $region16: #{tpu_custom_call.1} parent=1 // pred_region
      %39 = dma.done [#allocation3], 512
    $region17: #{tpu_custom_call.1} parent=1 // pred_fallthru
      _
    // Predicated region
    $region18: #{tpu_custom_call.1} parent=1 // pred_check
      _
    $region19: #{tpu_custom_call.1} parent=1 // pred_check_branch
      %41 = sbr.rel (0) target = $region21
    $region20: #{tpu_custom_call.1} parent=1 // pred_region
      %42 = dma.done [#allocation6], 8192
    $region21: #{tpu_custom_call.1} parent=1 // pred_fallthru
      _
    %v43 = vld [vmem:[#allocation2] sm:$0xff]
    %v44 = vld [vmem:[#allocation2 + $0x8] sm:$0xff]
    %v45 = vld [vmem:[#allocation2 + $0x10] sm:$0xff]
    %v46 = vld [vmem:[#allocation2 + $0x18] sm:$0xff]
    %v47 = vld [vmem:[#allocation5] sm:$0xff]
    %v48 = vld [vmem:[#allocation5 + $0x8] sm:$0xff]
    %v49 = vld [vmem:[#allocation5 + $0x10] sm:$0xff]
    %v50 = vld [vmem:[#allocation5 + $0x18] sm:$0xff]
    %v51 = vld [vmem:[#allocation5 + $0x20] sm:$0xff]
    %v52 = vld [vmem:[#allocation5 + $0x28] sm:$0xff]
    %v53 = vld [vmem:[#allocation5 + $0x30] sm:$0xff]
    %v54 = vld [vmem:[#allocation5 + $0x38] sm:$0xff]
    %v55 = vld [vmem:[#allocation5 + $0x40] sm:$0xff]
    %v56 = vld [vmem:[#allocation5 + $0x48] sm:$0xff]
    %v57 = vld [vmem:[#allocation5 + $0x50] sm:$0xff]
    %v58 = vld [vmem:[#allocation5 + $0x58] sm:$0xff]
    %v59 = vld [vmem:[#allocation5 + $0x60] sm:$0xff]
    %v60 = vld [vmem:[#allocation5 + $0x68] sm:$0xff]
    %v61 = vld [vmem:[#allocation5 + $0x70] sm:$0xff]
    %v62 = vld [vmem:[#allocation5 + $0x78] sm:$0xff]
    %v63 = vld [vmem:[#allocation5 + $0x80] sm:$0xff]
    %v64 = vld [vmem:[#allocation5 + $0x88] sm:$0xff]
    %v65 = vld [vmem:[#allocation5 + $0x90] sm:$0xff]
    %v66 = vld [vmem:[#allocation5 + $0x98] sm:$0xff]
    %v67 = vld [vmem:[#allocation5 + $0xa0] sm:$0xff]
    %v68 = vld [vmem:[#allocation5 + $0xa8] sm:$0xff]
    %v69 = vld [vmem:[#allocation5 + $0xb0] sm:$0xff]
    %v70 = vld [vmem:[#allocation5 + $0xb8] sm:$0xff]
    %v71 = vld [vmem:[#allocation5 + $0xc0] sm:$0xff]
    %v72 = vld [vmem:[#allocation5 + $0xc8] sm:$0xff]
    %v73 = vld [vmem:[#allocation5 + $0xd0] sm:$0xff]
    %v74 = vld [vmem:[#allocation5 + $0xd8] sm:$0xff]
    %v75 = vld [vmem:[#allocation5 + $0xe0] sm:$0xff]
    %v76 = vld [vmem:[#allocation5 + $0xe8] sm:$0xff]
    %v77 = vld [vmem:[#allocation5 + $0xf0] sm:$0xff]
    %v78 = vld [vmem:[#allocation5 + $0xf8] sm:$0xff]
    %v79 = vld [vmem:[#allocation5 + $0x100] sm:$0xff]
    %v80 = vld [vmem:[#allocation5 + $0x108] sm:$0xff]
    %v81 = vld [vmem:[#allocation5 + $0x110] sm:$0xff]
    %v82 = vld [vmem:[#allocation5 + $0x118] sm:$0xff]
    %v83 = vld [vmem:[#allocation5 + $0x120] sm:$0xff]
    %v84 = vld [vmem:[#allocation5 + $0x128] sm:$0xff]
    %v85 = vld [vmem:[#allocation5 + $0x130] sm:$0xff]
    %v86 = vld [vmem:[#allocation5 + $0x138] sm:$0xff]
    %v87 = vld [vmem:[#allocation5 + $0x140] sm:$0xff]
    %v88 = vld [vmem:[#allocation5 + $0x148] sm:$0xff]
    %v89 = vld [vmem:[#allocation5 + $0x150] sm:$0xff]
    %v90 = vld [vmem:[#allocation5 + $0x158] sm:$0xff]
    %v91 = vld [vmem:[#allocation5 + $0x160] sm:$0xff]
    %v92 = vld [vmem:[#allocation5 + $0x168] sm:$0xff]
    %v93 = vld [vmem:[#allocation5 + $0x170] sm:$0xff]
    %v94 = vld [vmem:[#allocation5 + $0x178] sm:$0xff]
    %v95 = vld [vmem:[#allocation5 + $0x180] sm:$0xff]
    %v96 = vld [vmem:[#allocation5 + $0x188] sm:$0xff]
    %v97 = vld [vmem:[#allocation5 + $0x190] sm:$0xff]
    %v98 = vld [vmem:[#allocation5 + $0x198] sm:$0xff]
    %v99 = vld [vmem:[#allocation5 + $0x1a0] sm:$0xff]
    %v100 = vld [vmem:[#allocation5 + $0x1a8] sm:$0xff]
    %v101 = vld [vmem:[#allocation5 + $0x1b0] sm:$0xff]
    %v102 = vld [vmem:[#allocation5 + $0x1b8] sm:$0xff]
    %v103 = vld [vmem:[#allocation5 + $0x1c0] sm:$0xff]
    %v104 = vld [vmem:[#allocation5 + $0x1c8] sm:$0xff]
    %v105 = vld [vmem:[#allocation5 + $0x1d0] sm:$0xff]
    %v106 = vld [vmem:[#allocation5 + $0x1d8] sm:$0xff]
    %v107 = vld [vmem:[#allocation5 + $0x1e0] sm:$0xff]
    %v108 = vld [vmem:[#allocation5 + $0x1e8] sm:$0xff]
    %v109 = vld [vmem:[#allocation5 + $0x1f0] sm:$0xff]
    %v110 = vld [vmem:[#allocation5 + $0x1f8] sm:$0xff]
    %v111 = vld [vmem:[%s2] sm:$0x1]
    %v112 = vld [vmem:[%s2 + $0x1] sm:$0x1]
    %v113 = vld [vmem:[%s2 + $0x2] sm:$0x1]
    %v114 = vld [vmem:[%s2 + $0x3] sm:$0x1]
    %v119 = vlaneseq
    %v120 = vshrl.u32 %v119, 7
    %v121 = vsub.s32 0, %v120
    %v122 = vrot.slane %v111, %v121
    %v123 = vlaneseq
    %v124 = vshrl.u32 %v123, 7
    %v125 = vsub.s32 0, %v124
    %v126 = vrot.slane %v112, %v125
    %v127 = vlaneseq
    %v128 = vshrl.u32 %v127, 7
    %v129 = vsub.s32 0, %v128
    %v130 = vrot.slane %v113, %v129
    %v131 = vlaneseq
    %v132 = vshrl.u32 %v131, 7
    %v133 = vsub.s32 0, %v132
    %v134 = vrot.slane %v114, %v133
    %139 = vmatprep.subr.mxu0 0.0
    %140 = vmatpush1.msra.mxu0 %v47
    %141 = vmatprep.subr.mxu0 0.0
    %142 = vmatpush1.msra.mxu0 %v48
    %143 = vmatprep.subr.mxu0 0.0
    %144 = vmatpush1.msra.mxu0 %v49
    %145 = vmatprep.subr.mxu0 0.0
    %146 = vmatpush1.msra.mxu0 %v50
    %147 = vmatprep.subr.mxu0 0.0
    %148 = vmatpush1.msra.mxu0 %v51
    %149 = vmatprep.subr.mxu0 0.0
    %150 = vmatpush1.msra.mxu0 %v52
    %151 = vmatprep.subr.mxu0 0.0
    %152 = vmatpush1.msra.mxu0 %v53
    %153 = vmatprep.subr.mxu0 0.0
    %154 = vmatpush1.msra.mxu0 %v54
    %155 = vmatprep.subr.mxu0 0.0
    %156 = vmatpush1.msra.mxu0 %v55
    %157 = vmatprep.subr.mxu0 0.0
    %158 = vmatpush1.msra.mxu0 %v56
    %159 = vmatprep.subr.mxu0 0.0
    %160 = vmatpush1.msra.mxu0 %v57
    %161 = vmatprep.subr.mxu0 0.0
    %162 = vmatpush1.msra.mxu0 %v58
    %163 = vmatprep.subr.mxu0 0.0
    %164 = vmatpush1.msra.mxu0 %v59
    %165 = vmatprep.subr.mxu0 0.0
    %166 = vmatpush1.msra.mxu0 %v60
    %167 = vmatprep.subr.mxu0 0.0
    %168 = vmatpush1.msra.mxu0 %v61
    %169 = vmatprep.subr.mxu0 0.0
    %170 = vmatpush1.msra.mxu0 %v62
    %171 = vmatprep.subr.mxu0 0.0
    %172 = vmatpush1.msra.mxu0 0.0
    %173 = vmatprep.subr.mxu0 0.0
    %174 = vmatpush1.msra.mxu0 0.0
    %175 = vmatprep.subr.mxu0 0.0
    %176 = vmatpush1.msra.mxu0 0.0
    %177 = vmatprep.subr.mxu0 0.0
    %178 = vmatpush1.msra.mxu0 0.0
    %179 = vmatprep.subr.mxu0 0.0
    %180 = vmatpush1.msra.mxu0 0.0
    %181 = vmatprep.subr.mxu0 0.0
    %182 = vmatpush1.msra.mxu0 0.0
    %183 = vmatprep.subr.mxu0 0.0
    %184 = vmatpush1.msra.mxu0 0.0
    %185 = vmatprep.subr.mxu0 0.0
    %186 = vmatpush1.msra.mxu0 0.0
    %187 = vmatprep.subr.mxu0 0.0
    %188 = vmatpush1.msra.mxu0 0.0
    %189 = vmatprep.subr.mxu0 0.0
    %190 = vmatpush1.msra.mxu0 0.0
    %191 = vmatprep.subr.mxu0 0.0
    %192 = vmatpush1.msra.mxu0 0.0
    %193 = vmatprep.subr.mxu0 0.0
    %194 = vmatpush1.msra.mxu0 0.0
    %195 = vmatprep.subr.mxu0 0.0
    %196 = vmatpush1.msra.mxu0 0.0
    %197 = vmatprep.subr.mxu0 0.0
    %198 = vmatpush1.msra.mxu0 0.0
    %199 = vmatprep.subr.mxu0 0.0
    %200 = vmatpush1.msra.mxu0 0.0
    %201 = vmatprep.subr.mxu0 0.0
    %202 = vmatpush1.msra.mxu0 0.0
    %203 = vmatprep.mubr.f32.mxu0 0.0
    %204 = vmatmul.mubr.f32.gmra.mrb[0].mxu0 %v43
    %v205 = vpop.f32.mrb[0].mxu0
    %v206 = vadd.f32 %v122, %v205
    %v207 = vpop.f32.mrb[0].mxu0
    %208 = vdwg.mxu0
    %209 = vmatprep.subr.mxu0 0.0
    %210 = vmatpush1.msra.mxu0 %v63
    %211 = vmatprep.subr.mxu0 0.0
    %212 = vmatpush1.msra.mxu0 %v64
    %213 = vmatprep.subr.mxu0 0.0
    %214 = vmatpush1.msra.mxu0 %v65
    %215 = vmatprep.subr.mxu0 0.0
    %216 = vmatpush1.msra.mxu0 %v66
    %217 = vmatprep.subr.mxu0 0.0
    %218 = vmatpush1.msra.mxu0 %v67
    %219 = vmatprep.subr.mxu0 0.0
    %220 = vmatpush1.msra.mxu0 %v68
    %221 = vmatprep.subr.mxu0 0.0
    %222 = vmatpush1.msra.mxu0 %v69
    %223 = vmatprep.subr.mxu0 0.0
    %224 = vmatpush1.msra.mxu0 %v70
    %225 = vmatprep.subr.mxu0 0.0
    %226 = vmatpush1.msra.mxu0 %v71
    %227 = vmatprep.subr.mxu0 0.0
    %228 = vmatpush1.msra.mxu0 %v72
    %229 = vmatprep.subr.mxu0 0.0
    %230 = vmatpush1.msra.mxu0 %v73
    %231 = vmatprep.subr.mxu0 0.0
    %232 = vmatpush1.msra.mxu0 %v74
    %233 = vmatprep.subr.mxu0 0.0
    %234 = vmatpush1.msra.mxu0 %v75
    %235 = vmatprep.subr.mxu0 0.0
    %236 = vmatpush1.msra.mxu0 %v76
    %237 = vmatprep.subr.mxu0 0.0
    %238 = vmatpush1.msra.mxu0 %v77
    %239 = vmatprep.subr.mxu0 0.0
    %240 = vmatpush1.msra.mxu0 %v78
    %241 = vmatprep.subr.mxu0 0.0
    %242 = vmatpush1.msra.mxu0 0.0
    %243 = vmatprep.subr.mxu0 0.0
    %244 = vmatpush1.msra.mxu0 0.0
    %245 = vmatprep.subr.mxu0 0.0
    %246 = vmatpush1.msra.mxu0 0.0
    %247 = vmatprep.subr.mxu0 0.0
    %248 = vmatpush1.msra.mxu0 0.0
    %249 = vmatprep.subr.mxu0 0.0
    %250 = vmatpush1.msra.mxu0 0.0
    %251 = vmatprep.subr.mxu0 0.0
    %252 = vmatpush1.msra.mxu0 0.0
    %253 = vmatprep.subr.mxu0 0.0
    %254 = vmatpush1.msra.mxu0 0.0
    %255 = vmatprep.subr.mxu0 0.0
    %256 = vmatpush1.msra.mxu0 0.0
    %257 = vmatprep.subr.mxu0 0.0
    %258 = vmatpush1.msra.mxu0 0.0
    %259 = vmatprep.subr.mxu0 0.0
    %260 = vmatpush1.msra.mxu0 0.0
    %261 = vmatprep.subr.mxu0 0.0
    %262 = vmatpush1.msra.mxu0 0.0
    %263 = vmatprep.subr.mxu0 0.0
    %264 = vmatpush1.msra.mxu0 0.0
    %265 = vmatprep.subr.mxu0 0.0
    %266 = vmatpush1.msra.mxu0 0.0
    %267 = vmatprep.subr.mxu0 0.0
    %268 = vmatpush1.msra.mxu0 0.0
    %269 = vmatprep.subr.mxu0 0.0
    %270 = vmatpush1.msra.mxu0 0.0
    %271 = vmatprep.subr.mxu0 0.0
    %272 = vmatpush1.msra.mxu0 0.0
    %273 = vmatprep.mubr.f32.mxu0 0.0
    %274 = vmatmul.mubr.f32.gmra.mrb[0].mxu0 %v44
    %v275 = vpop.f32.mrb[0].mxu0
    %v276 = vadd.f32 %v126, %v275
    %v277 = vpop.f32.mrb[0].mxu0
    %278 = vdwg.mxu0
    %279 = vmatprep.subr.mxu0 0.0
    %280 = vmatpush1.msra.mxu0 %v79
    %281 = vmatprep.subr.mxu0 0.0
    %282 = vmatpush1.msra.mxu0 %v80
    %283 = vmatprep.subr.mxu0 0.0
    %284 = vmatpush1.msra.mxu0 %v81
    %285 = vmatprep.subr.mxu0 0.0
    %286 = vmatpush1.msra.mxu0 %v82
    %287 = vmatprep.subr.mxu0 0.0
    %288 = vmatpush1.msra.mxu0 %v83
    %289 = vmatprep.subr.mxu0 0.0
    %290 = vmatpush1.msra.mxu0 %v84
    %291 = vmatprep.subr.mxu0 0.0
    %292 = vmatpush1.msra.mxu0 %v85
    %293 = vmatprep.subr.mxu0 0.0
    %294 = vmatpush1.msra.mxu0 %v86
    %295 = vmatprep.subr.mxu0 0.0
    %296 = vmatpush1.msra.mxu0 %v87
    %297 = vmatprep.subr.mxu0 0.0
    %298 = vmatpush1.msra.mxu0 %v88
    %299 = vmatprep.subr.mxu0 0.0
    %300 = vmatpush1.msra.mxu0 %v89
    %301 = vmatprep.subr.mxu0 0.0
    %302 = vmatpush1.msra.mxu0 %v90
    %303 = vmatprep.subr.mxu0 0.0
    %304 = vmatpush1.msra.mxu0 %v91
    %305 = vmatprep.subr.mxu0 0.0
    %306 = vmatpush1.msra.mxu0 %v92
    %307 = vmatprep.subr.mxu0 0.0
    %308 = vmatpush1.msra.mxu0 %v93
    %309 = vmatprep.subr.mxu0 0.0
    %310 = vmatpush1.msra.mxu0 %v94
    %311 = vmatprep.subr.mxu0 0.0
    %312 = vmatpush1.msra.mxu0 0.0
    %313 = vmatprep.subr.mxu0 0.0
    %314 = vmatpush1.msra.mxu0 0.0
    %315 = vmatprep.subr.mxu0 0.0
    %316 = vmatpush1.msra.mxu0 0.0
    %317 = vmatprep.subr.mxu0 0.0
    %318 = vmatpush1.msra.mxu0 0.0
    %319 = vmatprep.subr.mxu0 0.0
    %320 = vmatpush1.msra.mxu0 0.0
    %321 = vmatprep.subr.mxu0 0.0
    %322 = vmatpush1.msra.mxu0 0.0
    %323 = vmatprep.subr.mxu0 0.0
    %324 = vmatpush1.msra.mxu0 0.0
    %325 = vmatprep.subr.mxu0 0.0
    %326 = vmatpush1.msra.mxu0 0.0
    %327 = vmatprep.subr.mxu0 0.0
    %328 = vmatpush1.msra.mxu0 0.0
    %329 = vmatprep.subr.mxu0 0.0
    %330 = vmatpush1.msra.mxu0 0.0
    %331 = vmatprep.subr.mxu0 0.0
    %332 = vmatpush1.msra.mxu0 0.0
    %333 = vmatprep.subr.mxu0 0.0
    %334 = vmatpush1.msra.mxu0 0.0
    %335 = vmatprep.subr.mxu0 0.0
    %336 = vmatpush1.msra.mxu0 0.0
    %337 = vmatprep.subr.mxu0 0.0
    %338 = vmatpush1.msra.mxu0 0.0
    %339 = vmatprep.subr.mxu0 0.0
    %340 = vmatpush1.msra.mxu0 0.0
    %341 = vmatprep.subr.mxu0 0.0
    %342 = vmatpush1.msra.mxu0 0.0
    %343 = vmatprep.mubr.f32.mxu0 0.0
    %344 = vmatmul.mubr.f32.gmra.mrb[0].mxu0 %v45
    %v345 = vpop.f32.mrb[0].mxu0
    %v346 = vadd.f32 %v130, %v345
    %v347 = vpop.f32.mrb[0].mxu0
    %348 = vdwg.mxu0
    %349 = vmatprep.subr.mxu0 0.0
    %350 = vmatpush1.msra.mxu0 %v95
    %351 = vmatprep.subr.mxu0 0.0
    %352 = vmatpush1.msra.mxu0 %v96
    %353 = vmatprep.subr.mxu0 0.0
    %354 = vmatpush1.msra.mxu0 %v97
    %355 = vmatprep.subr.mxu0 0.0
    %356 = vmatpush1.msra.mxu0 %v98
    %357 = vmatprep.subr.mxu0 0.0
    %358 = vmatpush1.msra.mxu0 %v99
    %359 = vmatprep.subr.mxu0 0.0
    %360 = vmatpush1.msra.mxu0 %v100
    %361 = vmatprep.subr.mxu0 0.0
    %362 = vmatpush1.msra.mxu0 %v101
    %363 = vmatprep.subr.mxu0 0.0
    %364 = vmatpush1.msra.mxu0 %v102
    %365 = vmatprep.subr.mxu0 0.0
    %366 = vmatpush1.msra.mxu0 %v103
    %367 = vmatprep.subr.mxu0 0.0
    %368 = vmatpush1.msra.mxu0 %v104
    %369 = vmatprep.subr.mxu0 0.0
    %370 = vmatpush1.msra.mxu0 %v105
    %371 = vmatprep.subr.mxu0 0.0
    %372 = vmatpush1.msra.mxu0 %v106
    %373 = vmatprep.subr.mxu0 0.0
    %374 = vmatpush1.msra.mxu0 %v107
    %375 = vmatprep.subr.mxu0 0.0
    %376 = vmatpush1.msra.mxu0 %v108
    %377 = vmatprep.subr.mxu0 0.0
    %378 = vmatpush1.msra.mxu0 %v109
    %379 = vmatprep.subr.mxu0 0.0
    %380 = vmatpush1.msra.mxu0 %v110
    %381 = vmatprep.subr.mxu0 0.0
    %382 = vmatpush1.msra.mxu0 0.0
    %383 = vmatprep.subr.mxu0 0.0
    %384 = vmatpush1.msra.mxu0 0.0
    %385 = vmatprep.subr.mxu0 0.0
    %386 = vmatpush1.msra.mxu0 0.0
    %387 = vmatprep.subr.mxu0 0.0
    %388 = vmatpush1.msra.mxu0 0.0
    %389 = vmatprep.subr.mxu0 0.0
    %390 = vmatpush1.msra.mxu0 0.0
    %391 = vmatprep.subr.mxu0 0.0
    %392 = vmatpush1.msra.mxu0 0.0
    %393 = vmatprep.subr.mxu0 0.0
    %394 = vmatpush1.msra.mxu0 0.0
    %395 = vmatprep.subr.mxu0 0.0
    %396 = vmatpush1.msra.mxu0 0.0
    %397 = vmatprep.subr.mxu0 0.0
    %398 = vmatpush1.msra.mxu0 0.0
    %399 = vmatprep.subr.mxu0 0.0
    %400 = vmatpush1.msra.mxu0 0.0
    %401 = vmatprep.subr.mxu0 0.0
    %402 = vmatpush1.msra.mxu0 0.0
    %403 = vmatprep.subr.mxu0 0.0
    %404 = vmatpush1.msra.mxu0 0.0
    %405 = vmatprep.subr.mxu0 0.0
    %406 = vmatpush1.msra.mxu0 0.0
    %407 = vmatprep.subr.mxu0 0.0
    %408 = vmatpush1.msra.mxu0 0.0
    %409 = vmatprep.subr.mxu0 0.0
    %410 = vmatpush1.msra.mxu0 0.0
    %411 = vmatprep.subr.mxu0 0.0
    %412 = vmatpush1.msra.mxu0 0.0
    %413 = vmatprep.mubr.f32.mxu0 0.0
    %414 = vmatmul.mubr.f32.gmra.mrb[0].mxu0 %v46
    %v415 = vpop.f32.mrb[0].mxu0
    %v416 = vadd.f32 %v134, %v415
    %v417 = vpop.f32.mrb[0].mxu0
    %418 = vdwg.mxu0
    %419 = vst [vmem:[#allocation7] sm:$0xff] %v206
    %420 = vst [vmem:[#allocation7 + $0x8] sm:$0xff] %v276
    %421 = vst [vmem:[#allocation7 + $0x10] sm:$0xff] %v346
    %422 = vst [vmem:[#allocation7 + $0x18] sm:$0xff] %v416
    // Predicated region
    $region22: #{tpu_custom_call.1} parent=1 // pred_check
      _
    $region23: #{tpu_custom_call.1} parent=1 // pred_check_branch
      %424 = sbr.rel (0) target = $region25
    $region24: #{tpu_custom_call.1} parent=1 // pred_region
      %s426 = ssub.s32 512, 512
      %427 = vsyncadd [#allocation4], %s426
      %s428 = sshll.u32 [#allocation7], 4
      %s429 = int_to_ptr.vmem [resolvable:$true] %s428
      %434 = dma.vmem_to_hbm [thread:$0]  %s429, 512, %s3, [#allocation4], 128, 128, 8
    $region25: #{tpu_custom_call.1} parent=1 // pred_fallthru
      _
    // Predicated region
    $region26: #{tpu_custom_call.1} parent=1 // pred_check
      _
    $region27: #{tpu_custom_call.1} parent=1 // pred_check_branch
      %436 = sbr.rel (0) target = $region29
    $region28: #{tpu_custom_call.1} parent=1 // pred_region
      %437 = dma.done [#allocation4], 512
    $region29: #{tpu_custom_call.1} parent=1 // pred_fallthru
      _
    %438 = vsyncpa [#allocation3], 1
    %439 = vsyncpa [#allocation6], 1
    %440 = vsyncpa [#allocation4], 1

</llo_original>
